<compile_context>
chip_gen: v6e
topology: v6e:2x2x1
jax: 0.10.0
libtpu: 0.0.40
codegen_flags: <defaults>
</compile_context>

<pallas_src>
import functools

import jax
import jax.numpy as jnp
from jax import lax
from jax.experimental import pallas as pl
from jax.experimental.pallas import tpu as pltpu


def _round_up(x, m):
    return -(-x // m) * m


def _num_tensorcores_per_chip():
    # v7x exposes 2 TensorCores per chip; v5e/v6e have 1.  Conservative default.
    try:
        kind = (jax.devices()[0].device_kind or "").lower()
    except Exception:
        return 1
    return 2 if ("v7" in kind or "7x" in kind) else 1


def _vmem_capacity_bytes():
    try:
        return int(pltpu.get_tpu_info().vmem_capacity_bytes)
    except Exception:
        return 64 << 20  # conservative: v7x per-TC VMEM


def _joints_mse_kernel(pred_ref, gt_ref, wsq_ref, out_ref, *,
                       total_rows, tile_rows, inner_steps, num_blocks,
                       mask_start):
    c = pl.program_id(0)
    b = pl.program_id(1)
    g = c * inner_steps + b                      # logical row-block index

    @pl.when(b == 0)
    def _():
        out_ref[...] = jnp.zeros_like(out_ref)

    # Upcast to f32 *before* the subtract: matches the f32 reference for bf16
    # inputs; free on the DMA-bound path (v5e has no bf16 VALU anyway).
    diff = pred_ref[...].astype(jnp.float32) - gt_ref[...].astype(jnp.float32)
    row_sq = jnp.sum(diff * diff, axis=1, keepdims=True)          # (TR, 1)

    # wsq is VMEM-resident for the whole grid; slice this block's row window.
    g_clamped = jnp.minimum(g, num_blocks - 1)
    row0 = g_clamped * tile_rows
    if tile_rows % 8 == 0:
        row0 = pl.multiple_of(row0, 8)
    contrib = row_sq * wsq_ref[pl.ds(row0, tile_rows), :]          # (TR, 1)

    if mask_start is None:
        out_ref[...] += contrib
    else:
        # Steady-state blocks accumulate unmasked; only the last (partial)
        # block and the possible duplicated overshoot block pay the mask.
        @pl.when(g < mask_start)
        def _():
            out_ref[...] += contrib

        @pl.when(g >= mask_start)
        def _():
            rid = g * tile_rows + lax.broadcasted_iota(
                jnp.int32, (tile_rows, 1), 0)
            # Keep this a select (NOT multiply-by-mask): padded rows may hold
            # unspecified data (NaN/Inf); 0*Inf would poison the sum.
            out_ref[...] += jnp.where(rid < total_rows, contrib, 0.0)


def joints_mse_loss(output, target, target_weight=None, *,
                    use_target_weight=True):
    """output/target: (B, J, H, W); target_weight: (B, J, 1)."""
    B, J, H, W = output.shape
    HW = H * W
    R = B * J
    itemsize = jnp.dtype(output.dtype).itemsize

    # Free, contiguous reshapes -- no HBM-materialized transpose.
    pred = output.reshape(R, HW)
    gt = target.reshape(R, HW)

    if use_target_weight:
        assert target_weight is not None
        wsq = (target_weight.reshape(R, 1).astype(jnp.float32)) ** 2
    else:
        wsq = jnp.ones((R, 1), dtype=jnp.float32)

    # ---- generation-aware tiling --------------------------------------------
    num_cores = _num_tensorcores_per_chip()
    vmem_capacity = _vmem_capacity_bytes()
    # ~12 MiB blocks on v5e/v6e (128 MiB VMEM), ~8 MiB on v7x (64 MiB per TC).
    target_block_bytes = (12 << 20) if vmem_capacity >= (100 << 20) else (8 << 20)

    # Native sublane multiple for the streaming dtype (8/f32, 16/bf16, 32/8-bit).
    sub = max(8, 32 // itemsize)

    # Rows per block limited by the per-block byte budget ...
    rows_fit = max(sub, ((target_block_bytes // max(1, HW * itemsize)) // sub) * sub)
    # ... and keep at least a few blocks so the DMA pipeline (and the 2-core
    # split on v7x) has something to overlap, even if everything would fit.
    min_blocks = max(2 * num_cores, 4)
    rows_split = max(sub, _round_up(-(-R // min_blocks), sub))
    tile_rows = min(rows_fit, rows_split, _round_up(R, sub))
    if tile_rows > R:
        tile_rows = R           # only when R < sub: full-dim block is legal
    # TODO(synk): heatmaps with HW so large that `sub` rows exceed the VMEM
    # budget would also need lane-axis tiling; not needed for real heatmaps.

    if tile_rows % 8 != 0:
        num_cores = 1           # tiny problem; keep full-dim block, one core

    num_blocks = -(-R // tile_rows)
    inner_steps = -(-num_blocks // num_cores)
    total_steps = num_cores * inner_steps

    # Rows >= R live either in the ragged tail of the last real block or in a
    # duplicated overshoot block (odd split on 2 cores); both get masked.
    mask_start = (num_blocks - 1) if (R % tile_rows) != 0 else num_blocks
    if mask_start >= total_steps:
        mask_start = None

    # Pad wsq so the clamped in-kernel slice is always in bounds; it stays
    # resident in VMEM for the whole grid (one tiny DMA total).
    R_pad = num_blocks * tile_rows
    if R_pad != R:
        wsq = jnp.pad(wsq, ((0, R_pad - R), (0, 0)))

    kernel = functools.partial(
        _joints_mse_kernel,
        total_rows=R, tile_rows=tile_rows, inner_steps=inner_steps,
        num_blocks=num_blocks, mask_start=mask_start)

    def row_map(c, b):
        # Clamp the overshoot step to the last real block; its rows are masked.
        return (jnp.minimum(c * inner_steps + b, num_blocks - 1), 0)

    block_bytes = tile_rows * HW * itemsize
    vmem_needed = 4 * block_bytes + R_pad * 4 + (8 << 20)   # 2 inputs x 2 bufs
    vmem_cap = (56 << 20) if vmem_capacity < (100 << 20) else (100 << 20)
    vmem_limit = max(32 << 20, min(vmem_needed, vmem_cap))

    cost = pl.CostEstimate(
        flops=3 * R * HW,
        transcendentals=0,
        bytes_accessed=2 * R * HW * itemsize + R_pad * 4 + total_steps * tile_rows * 4,
    )

    sem0 = pltpu.CORE_PARALLEL if num_cores > 1 else pltpu.PARALLEL

    partials = pl.pallas_call(
        kernel,
        out_shape=jax.ShapeDtypeStruct((num_cores * tile_rows, 1), jnp.float32),
        grid_spec=pltpu.PrefetchScalarGridSpec(
            num_scalar_prefetch=0,
            grid=(num_cores, inner_steps),
            in_specs=[
                pl.BlockSpec((tile_rows, HW), row_map),
                pl.BlockSpec((tile_rows, HW), row_map),
                pl.BlockSpec((R_pad, 1), lambda c, b: (0, 0)),   # VMEM-resident
            ],
            out_specs=pl.BlockSpec((tile_rows, 1), lambda c, b: (c, 0)),
        ),
        compiler_params=pltpu.CompilerParams(
            dimension_semantics=(sem0, pltpu.ARBITRARY),
            vmem_limit_bytes=int(vmem_limit),
        ),
        cost_estimate=cost,
    )(pred, gt, wsq)

    # Final tiny reduce + scale in JAX: 0.5 * sum(w^2 (p-g)^2) / (J*B*HW).
    return 0.5 * jnp.sum(partials) / (J * B * HW)


def _reference_loss(output, target, target_weight, use_target_weight):
    B, J, H, W = output.shape
    pred = output.reshape(B, J, -1).astype(jnp.float32)
    gt = target.reshape(B, J, -1).astype(jnp.float32)
    loss = 0.0
    for idx in range(J):
        hp = pred[:, idx, :]
        hg = gt[:, idx, :]
        if use_target_weight:
            wj = target_weight[:, idx]           # (B, 1)
            hp = hp * wj
            hg = hg * wj
        loss = loss + 0.5 * jnp.mean((hp - hg) ** 2)
    return loss / J


if __name__ == "__main__":
    key = jax.random.PRNGKey(0)
    k1, k2, k3 = jax.random.split(key, 3)

    B, J, H, W = 2, 4, 16, 16
    output = jax.random.normal(k1, (B, J, H, W), dtype=jnp.float32)
    target = jax.random.normal(k2, (B, J, H, W), dtype=jnp.float32)
    target_weight = jax.random.uniform(k3, (B, J, 1), dtype=jnp.float32)

    # use_target_weight=True path
    loss = joints_mse_loss(output, target, target_weight, use_target_weight=True)
    loss = jax.block_until_ready(loss)
    ref = _reference_loss(output, target, target_weight, True)
    assert jnp.allclose(loss, ref, rtol=1e-5, atol=1e-6), (loss, ref)

    # use_target_weight=False path
    loss_nw = joints_mse_loss(output, target, None, use_target_weight=False)
    loss_nw = jax.block_until_ready(loss_nw)
    ref_nw = _reference_loss(output, target, None, False)
    assert jnp.allclose(loss_nw, ref_nw, rtol=1e-5, atol=1e-6), (loss_nw, ref_nw)

    print("KERNEL_OK")
</pallas_src>

<mosaic_0001>
module attributes {stable_mosaic.version = 11 : i64} {
  func.func @_joints_mse_kernel(%arg0: i32, %arg1: i32, %arg2: memref<8x256xf32, #tpu.memory_space<vmem>>, %arg3: memref<8x256xf32, #tpu.memory_space<vmem>>, %arg4: memref<8x1xf32, #tpu.memory_space<vmem>>, %arg5: memref<8x1xf32, #tpu.memory_space<vmem>>) attributes {dimension_semantics = [#tpu.dimension_semantics<parallel>, #tpu.dimension_semantics<arbitrary>], iteration_bounds = array<i64: 1, 1>, scalar_prefetch = 0 : i64, scratch_operands = 0 : i64, tpu.core_type = #tpu.core_type<tc>, window_params = [{transform_indices = @transform_0, window_bounds = array<i64: 8, 256>}, {transform_indices = @transform_1, window_bounds = array<i64: 8, 256>}, {pipeline_mode = #tpu.pipeline_mode<synchronous>, transform_indices = @transform_2, window_bounds = array<i64: 8, 1>}, {transform_indices = @transform_3, window_bounds = array<i64: 8, 1>}]} {
    %c1_i32 = arith.constant 1 : i32
    %0 = arith.muli %arg0, %c1_i32 : i32
    %1 = arith.addi %0, %arg1 : i32
    %c0_i32 = arith.constant 0 : i32
    %2 = arith.cmpi eq, %arg1, %c0_i32 : i32
    %3 = arith.extui %2 : i1 to i32
    %c0_i32_0 = arith.constant 0 : i32
    %4 = arith.cmpi ne, %3, %c0_i32_0 : i32
    scf.if %4 {
      %cst_10 = arith.constant 0.000000e+00 : f32
      %20 = vector.broadcast %cst_10 : f32 to vector<8x1xf32>
      %c0_11 = arith.constant 0 : index
      %c0_12 = arith.constant 0 : index
      %21 = vector.load %arg5[%c0_11, %c0_12] : memref<8x1xf32, #tpu.memory_space<vmem>>, vector<8x1xf32>
      tpu.vector_store %arg5[%c0_11, %c0_12], %20 {strides = array<i32>} : memref<8x1xf32, #tpu.memory_space<vmem>>, vector<8x1xf32>,
    } else {
    }
    %c0 = arith.constant 0 : index
    %c0_1 = arith.constant 0 : index
    %5 = vector.load %arg2[%c0, %c0_1] : memref<8x256xf32, #tpu.memory_space<vmem>>, vector<8x256xf32>
    %c0_2 = arith.constant 0 : index
    %c0_3 = arith.constant 0 : index
    %6 = vector.load %arg3[%c0_2, %c0_3] : memref<8x256xf32, #tpu.memory_space<vmem>>, vector<8x256xf32>
    %7 = arith.subf %5, %6 : vector<8x256xf32>
    %8 = arith.mulf %7, %7 : vector<8x256xf32>
    %cst = arith.constant dense<0.000000e+00> : vector<8xf32>
    %9 = vector.multi_reduction <add>, %8, %cst [1] : vector<8x256xf32> to vector<8xf32>
    %10 = vector.shape_cast %9 : vector<8xf32> to vector<8x1xf32>
    %c0_i32_4 = arith.constant 0 : i32
    %11 = arith.minsi %1, %c0_i32_4 : i32
    %c8_i32 = arith.constant 8 : i32
    %12 = arith.muli %11, %c8_i32 : i32
    %13 = tpu.assume_multiple %12, 8 : i32
    %14 = arith.index_cast %13 : i32 to index
    %c0_5 = arith.constant 0 : index
    %15 = vector.load %arg4[%14, %c0_5] : memref<8x1xf32, #tpu.memory_space<vmem>>, vector<8x1xf32>
    %16 = arith.mulf %10, %15 : vector<8x1xf32>
    %c0_6 = arith.constant 0 : index
    %c0_7 = arith.constant 0 : index
    %17 = vector.load %arg5[%c0_6, %c0_7] : memref<8x1xf32, #tpu.memory_space<vmem>>, vector<8x1xf32>
    %18 = arith.addf %17, %16 : vector<8x1xf32>
    %c0_8 = arith.constant 0 : index
    %c0_9 = arith.constant 0 : index
    %19 = vector.load %arg5[%c0_8, %c0_9] : memref<8x1xf32, #tpu.memory_space<vmem>>, vector<8x1xf32>
    tpu.vector_store %arg5[%c0_8, %c0_9], %18 {strides = array<i32>} : memref<8x1xf32, #tpu.memory_space<vmem>>, vector<8x1xf32>,
    return
  }
  func.func @transform_0(%arg0: i32, %arg1: i32) -> (i32, i32) {
    %c1_i32 = arith.constant 1 : i32
    %0 = arith.muli %arg0, %c1_i32 : i32
    %1 = arith.addi %0, %arg1 : i32
    %c0_i32 = arith.constant 0 : i32
    %2 = arith.minsi %1, %c0_i32 : i32
    %c0_i32_0 = arith.constant 0 : i32
    %c0_i32_1 = arith.constant 0 : i32
    return %2, %c0_i32_0 : i32, i32
  }
  func.func @transform_1(%arg0: i32, %arg1: i32) -> (i32, i32) {
    %c1_i32 = arith.constant 1 : i32
    %0 = arith.muli %arg0, %c1_i32 : i32
    %1 = arith.addi %0, %arg1 : i32
    %c0_i32 = arith.constant 0 : i32
    %2 = arith.minsi %1, %c0_i32 : i32
    %c0_i32_0 = arith.constant 0 : i32
    %c0_i32_1 = arith.constant 0 : i32
    return %2, %c0_i32_0 : i32, i32
  }
  func.func @transform_2(%arg0: i32, %arg1: i32) -> (i32, i32) {
    %c0_i32 = arith.constant 0 : i32
    %c0_i32_0 = arith.constant 0 : i32
    %c0_i32_1 = arith.constant 0 : i32
    return %c0_i32, %c0_i32_0 : i32, i32
  }
  func.func @transform_3(%arg0: i32, %arg1: i32) -> (i32, i32) {
    %c0_i32 = arith.constant 0 : i32
    %c0_i32_0 = arith.constant 0 : i32
    return %arg0, %c0_i32 : i32, i32
  }
}

</mosaic_0001>

<llo_original>
// kernel: tpu_custom_call.1
$region0: #{tpu_custom_call.1}
  #allocation0 [shape = 'u32[]', space=smem, size = 0x4, offset = 0x4, fixed_abs, tag = 'smem constant byte address 0x4 - core index']
  #allocation1 [shape = 'u32[144,128]{1,0:T(1,128)}', space=vmem, size = 0x12000, scoped, tag = 'internal scratch']
  %s0 = inlined_call_operand.hbm [shape: f32[8,256], index: 0, kind: input, shape index: {}]
  %s1 = inlined_call_operand.hbm [shape: f32[8,256], index: 1, kind: input, shape index: {}]
  %s2 = inlined_call_operand.vmem [shape: f32[8,1], index: 2, kind: input, shape index: {}]
  %s3 = inlined_call_operand.vmem [shape: f32[8,1], index: 3, kind: output, shape index: {}]
  %s4 = sld [smem:[#allocation0]]
  $region34: #{tpu_custom_call.1} parent=0
    _
  %s6 = ssub.s32 1, %s4
  %s7 = scalar_select 0, %s6, %s4
  $region1: #{tpu_custom_call.1} parent=0
    #allocation2 [shape = 'u8[8192]{0}', space=vmem, size = 0x2000, scoped, tag = 'input window, operand 0, single buffered']
    #allocation3 [shape = 's32[1]{0}', space=sflag, size = 0x4, scoped, tag = 'scoped memory for tpu_custom_call.1']
    #allocation4 [shape = 'u8[8192]{0}', space=vmem, size = 0x2000, scoped, tag = 'input window, operand 1, single buffered']
    #allocation5 [shape = 's32[1]{0}', space=sflag, size = 0x4, scoped, tag = 'scoped memory for tpu_custom_call.1']
    %8 = vsyncpa [#allocation3], 0
    %9 = vsyncpa [#allocation5], 0
    // Predicated region
    $region2: #{tpu_custom_call.1} parent=1 // pred_check
      _
    $region3: #{tpu_custom_call.1} parent=1 // pred_check_branch
      %11 = sbr.rel (0) target = $region5
    $region4: #{tpu_custom_call.1} parent=1 // pred_region
      %s12 = sadd.s32 0, 0
      %p13 = scmp.lt.s32.totalorder %s12, 0
      %s14 = scalar_select %p13, %s12, 0
      %s16 = ssub.s32 256, 256
      %17 = vsyncadd [#allocation3], %s16
      %s18 = smul.addr %s14, 2
      %s19 = smul.addr %s18, 128
      %s20 = scalar_lea.hbm %s0, %s19
      %s22 = sshll.u32 [#allocation2], 4
      %s23 = int_to_ptr.vmem [resolvable:$true] %s22
      %25 = dma.hbm_to_vmem [thread:$0]  %s20, 256, %s23, [#allocation3]
    $region5: #{tpu_custom_call.1} parent=1 // pred_fallthru
      _
    // Predicated region
    $region6: #{tpu_custom_call.1} parent=1 // pred_check
      _
    $region7: #{tpu_custom_call.1} parent=1 // pred_check_branch
      %27 = sbr.rel (0) target = $region9
    $region8: #{tpu_custom_call.1} parent=1 // pred_region
      %s28 = sadd.s32 0, 0
      %p29 = scmp.lt.s32.totalorder %s28, 0
      %s30 = scalar_select %p29, %s28, 0
      %s32 = ssub.s32 256, 256
      %33 = vsyncadd [#allocation5], %s32
      %s34 = smul.addr %s30, 2
      %s35 = smul.addr %s34, 128
      %s36 = scalar_lea.hbm %s1, %s35
      %s38 = sshll.u32 [#allocation4], 4
      %s39 = int_to_ptr.vmem [resolvable:$true] %s38
      %41 = dma.hbm_to_vmem [thread:$0]  %s36, 256, %s39, [#allocation5]
    $region9: #{tpu_custom_call.1} parent=1 // pred_fallthru
      _
    // Predicated region
    $region10: #{tpu_custom_call.1} parent=1 // pred_check
      _
    $region11: #{tpu_custom_call.1} parent=1 // pred_check_branch
      %43 = sbr.rel (0) target = $region13
    $region12: #{tpu_custom_call.1} parent=1 // pred_region
      _
    $region13: #{tpu_custom_call.1} parent=1 // pred_fallthru
      _
    // Predicated region
    $region14: #{tpu_custom_call.1} parent=1 // pred_check
      _
    $region15: #{tpu_custom_call.1} parent=1 // pred_check_branch
      %45 = sbr.rel (0) target = $region17
    $region16: #{tpu_custom_call.1} parent=1 // pred_region
      %46 = dma.done [#allocation3], 256
    $region17: #{tpu_custom_call.1} parent=1 // pred_fallthru
      _
    // Predicated region
    $region18: #{tpu_custom_call.1} parent=1 // pred_check
      _
    $region19: #{tpu_custom_call.1} parent=1 // pred_check_branch
      %48 = sbr.rel (0) target = $region21
    $region20: #{tpu_custom_call.1} parent=1 // pred_region
      %49 = dma.done [#allocation5], 256
    $region21: #{tpu_custom_call.1} parent=1 // pred_fallthru
      _
    %s50 = sadd.s32 0, 0
    %p51 = scmp.lt.s32.totalorder %s50, 0
    %s52 = scalar_select %p51, %s50, 0
    %s53 = sadd.s32 0, 0
    %p54 = scmp.lt.s32.totalorder %s53, 0
    %s55 = scalar_select %p54, %s53, 0
    %s56 = sadd.s32 0, 0
    %p57 = scmp.eq.s32.totalorder 0, 0
    // Predicated region
    $region22: #{tpu_custom_call.1} parent=1 // pred_check
      %p58 = pneg %p57
    $region23: #{tpu_custom_call.1} parent=1 // pred_check_branch
      %60 = sbr.rel (%p58) target = $region25
    $region24: #{tpu_custom_call.1} parent=1 // pred_region
      %vm61 = vcmask 7168
      %62 = vst.msk [vmem:[%s3] sm:$0xff] %vm61, 0.0
    $region25: #{tpu_custom_call.1} parent=1 // pred_fallthru
      _
    %v63 = vld [vmem:[#allocation2] sm:$0xff]
    %v64 = vld [vmem:[#allocation2 + $0x8] sm:$0xff]
    %v65 = vld [vmem:[#allocation4] sm:$0xff]
    %v66 = vld [vmem:[#allocation4 + $0x8] sm:$0xff]
    %v67 = vsub.f32 %v63, %v65
    %v68 = vsub.f32 %v64, %v66
    %v69 = vmul.f32 %v67, %v67
    %v70 = vmul.f32 %v68, %v68
    %v71 = vadd.f32 %v69, %v70
    %72 = vadd.xlane.f32.xlu0 %v71
    %v73 = vpop.xlane.xlu0 %72
    %p74 = scmp.lt.s32.totalorder %s56, 0
    %s75 = scalar_select %p74, %s56, 0
    %s76 = smul.u32 %s75, 8
    %s77 = scalar_lea.vmem %s2, %s76
    %v78 = vld [vmem:[%s77] sm:$0xff]
    %v79 = vmul.f32 %v73, %v78
    %v80 = vld [vmem:[%s3] sm:$0xff]
    %v81 = vadd.f32 %v80, %v79
    %vm82 = vcmask 7168
    %83 = vst.msk [vmem:[%s3] sm:$0xff] %vm82, %v81
    // Predicated region
    $region26: #{tpu_custom_call.1} parent=1 // pred_check
      _
    $region27: #{tpu_custom_call.1} parent=1 // pred_check_branch
      %85 = sbr.rel (0) target = $region29
    $region28: #{tpu_custom_call.1} parent=1 // pred_region
      _
    $region29: #{tpu_custom_call.1} parent=1 // pred_fallthru
      _
    // Predicated region
    $region30: #{tpu_custom_call.1} parent=1 // pred_check
      _
    $region31: #{tpu_custom_call.1} parent=1 // pred_check_branch
      %87 = sbr.rel (0) target = $region33
    $region32: #{tpu_custom_call.1} parent=1 // pred_region
      _
    $region33: #{tpu_custom_call.1} parent=1 // pred_fallthru
      _
    %88 = vsyncpa [#allocation3], 1
    %89 = vsyncpa [#allocation5], 1

</llo_original>
